<compile_context>
chip_gen: v6e
topology: v6e:2x2x1
jax: 0.10.0
libtpu: 0.0.40
codegen_flags: <defaults>
</compile_context>

<pallas_src>
import jax
import jax.numpy as jnp
from jax.experimental import pallas as pl
from jax.experimental.pallas import tpu as pltpu


def mlp_kernel(x_ref, w1_ref, b1_ref, w2_ref, b2_ref, w3_ref, b3_ref,
               w4_ref, b4_ref, o_ref):
    """One (TM, in_dim) batch tile through the fused 4-layer MLP.

    All matmuls hit the MXU with bf16 operands / f32 accumulation; bias add and
    ReLU run in f32 on the VPU. Intermediate activations never touch HBM.
    """
    x = x_ref[...].astype(jnp.bfloat16)                       # in-kernel cast (free on VPU)

    h = jnp.dot(x, w1_ref[...], preferred_element_type=jnp.float32) + b1_ref[...]
    h = jnp.maximum(h, 0.0).astype(jnp.bfloat16)

    h = jnp.dot(h, w2_ref[...], preferred_element_type=jnp.float32) + b2_ref[...]
    h = jnp.maximum(h, 0.0).astype(jnp.bfloat16)

    h = jnp.dot(h, w3_ref[...], preferred_element_type=jnp.float32) + b3_ref[...]
    h = jnp.maximum(h, 0.0).astype(jnp.bfloat16)

    out = jnp.dot(h, w4_ref[...], preferred_element_type=jnp.float32) + b4_ref[...]
    o_ref[...] = out.astype(o_ref.dtype)                      # narrow (TM, out_dim) store


def _round_up(n, m):
    return ((n + m - 1) // m) * m


def _choose_tm(batch):
    """Batch tile size.

    Small batches: one tile rounded up to the 8-row sublane (no per-step
    overhead to amortize). Large batches: biggest tile (<=2048) with <10%
    padded-row waste while keeping >=2 grid steps (v7x megacore gets both
    cores busy). VMEM is never the constraint (per-step footprint < 2 MiB).
    """
    if batch <= 512:
        return max(8, _round_up(batch, 8))
    candidates = (2048, 1024, 512, 256, 128, 64, 32, 16, 8)
    viable = [t for t in candidates if _round_up(batch, t) // t >= 2]
    for t in viable:
        if (_round_up(batch, t) - batch) * 10 <= batch:
            return t
    # Awkward batch sizes: minimize padded rows, prefer larger tiles on ties.
    return min(viable, key=lambda t: (_round_up(batch, t), -t))


def prepare_params(params):
    """One-time (outside the per-call jit) bf16 cast of the weights.

    Biases stay f32 so the bias-add / ReLU epilogue runs in f32 on the VPU.
    """
    w1, b1, w2, b2, w3, b3, w4, b4 = params
    bf16 = jnp.bfloat16
    return (w1.astype(bf16), b1.astype(jnp.float32),
            w2.astype(bf16), b2.astype(jnp.float32),
            w3.astype(bf16), b3.astype(jnp.float32),
            w4.astype(bf16), b4.astype(jnp.float32))


@jax.jit
def mlp_forward(x, prepped_params):
    """Fused MLP forward.

    Args:
      x: [batch, input_dim] float32.
      prepped_params: output of prepare_params() — bf16 weights [in, out],
        f32 biases [1, out].
    Returns:
      [batch, output_dim] float32 logits (pre-softmax), matching the PyTorch module.
    """
    w1, b1, w2, b2, w3, b3, w4, b4 = prepped_params
    batch, in_dim = x.shape
    out_dim = w4.shape[1]

    tm = _choose_tm(batch)
    padded_batch = _round_up(batch, tm)
    grid = (padded_batch // tm,)

    x_p = x
    if padded_batch != batch:
        x_p = jnp.pad(x_p, ((0, padded_batch - batch), (0, 0)))

    def resident(shape):
        # Same block index every grid step -> weight/bias stays VMEM-resident.
        return pl.BlockSpec(shape, lambda i: (0, 0))

    flops = 2 * padded_batch * (in_dim * w1.shape[1]
                                + w1.shape[1] * w2.shape[1]
                                + w2.shape[1] * w3.shape[1]
                                + w3.shape[1] * out_dim)
    bytes_accessed = (int(x_p.size) * 4                       # f32 activations in
                      + padded_batch * out_dim * 4            # f32 logits out (narrow)
                      + sum(int(p.size) for p in (w1, w2, w3, w4)) * 2
                      + sum(int(p.size) for p in (b1, b2, b3, b4)) * 4)

    out_padded = pl.pallas_call(
        mlp_kernel,
        out_shape=jax.ShapeDtypeStruct((padded_batch, out_dim), jnp.float32),
        grid=grid,
        in_specs=[
            pl.BlockSpec((tm, in_dim), lambda i: (i, 0)),     # streamed batch tile (f32)
            resident(w1.shape), resident(b1.shape),
            resident(w2.shape), resident(b2.shape),
            resident(w3.shape), resident(b3.shape),
            resident(w4.shape), resident(b4.shape),
        ],
        out_specs=pl.BlockSpec((tm, out_dim), lambda i: (i, 0)),
        compiler_params=pltpu.CompilerParams(
            dimension_semantics=("parallel",),                # megacore on v7x
            vmem_limit_bytes=32 * 1024 * 1024,                # safe on v7x's 64 MiB VMEM
        ),
        cost_estimate=pl.CostEstimate(
            flops=flops, transcendentals=0, bytes_accessed=bytes_accessed),
    )(x_p, w1, b1, w2, b2, w3, b3, w4, b4)

    if padded_batch != batch:
        out_padded = out_padded[:batch]
    return out_padded


def _linear_init(key, fan_in, fan_out):
    """Mirrors PyTorch nn.Linear defaults: U(-1/sqrt(fan_in), 1/sqrt(fan_in)).
    Weight returned as [fan_in, fan_out] (transposed for x @ W)."""
    bound = 1.0 / jnp.sqrt(jnp.array(fan_in, jnp.float32))
    kw, kb = jax.random.split(key)
    w = jax.random.uniform(kw, (fan_in, fan_out), jnp.float32, -bound, bound)
    b = jax.random.uniform(kb, (1, fan_out), jnp.float32, -bound, bound)
    return w, b


def make_mlp_params(key, input_dim, hidden_dims=(32, 64, 128), output_dim=8):
    dims = [input_dim] + list(hidden_dims) + [output_dim]
    params = []
    for i in range(len(dims) - 1):
        key, sub = jax.random.split(key)
        w, b = _linear_init(sub, dims[i], dims[i + 1])
        params.extend([w, b])
    return tuple(params)


def ref_forward(x, params):
    """Pure-JAX reference mirroring the kernel's bf16-operand / f32-accumulate math."""
    w1, b1, w2, b2, w3, b3, w4, b4 = params
    bf16, f32 = jnp.bfloat16, jnp.float32
    h = jnp.maximum(jnp.dot(x.astype(bf16), w1.astype(bf16),
                            preferred_element_type=f32) + b1, 0.0)
    h = jnp.maximum(jnp.dot(h.astype(bf16), w2.astype(bf16),
                            preferred_element_type=f32) + b2, 0.0)
    h = jnp.maximum(jnp.dot(h.astype(bf16), w3.astype(bf16),
                            preferred_element_type=f32) + b3, 0.0)
    return jnp.dot(h.astype(bf16), w4.astype(bf16),
                   preferred_element_type=f32) + b4


if __name__ == "__main__":
    # TODO(synk): use_patch_embedding=True path (per-group Linear+LayerNorm) not
    # implemented; this covers the default use_patch_embedding=False forward.
    key = jax.random.PRNGKey(0)
    k_x, k_p = jax.random.split(key)

    batch = 8
    input_dim = 64          # use_patch_embedding=False -> prev_dim = input_dim
    hidden_dims = (32, 64, 128)
    output_dim = 8

    x = jax.random.normal(k_x, (batch, input_dim), jnp.float32)
    params = make_mlp_params(k_p, input_dim, hidden_dims, output_dim)
    prepped = prepare_params(params)   # one-time bf16 weight cast (outside jit)

    out = mlp_forward(x, prepped)
    jax.block_until_ready(out)

    expected = ref_forward(x, params)
    assert out.shape == (batch, output_dim)
    assert jnp.allclose(out, expected, atol=1e-3, rtol=1e-3), (
        float(jnp.max(jnp.abs(out - expected))))

    print("KERNEL_OK")
</pallas_src>

<mosaic_0001>
module attributes {stable_mosaic.version = 11 : i64} {
  func.func @mlp_kernel(%arg0: i32, %arg1: memref<8x64xf32, #tpu.memory_space<vmem>>, %arg2: memref<64x32xbf16, #tpu.memory_space<vmem>>, %arg3: memref<1x32xf32, #tpu.memory_space<vmem>>, %arg4: memref<32x64xbf16, #tpu.memory_space<vmem>>, %arg5: memref<1x64xf32, #tpu.memory_space<vmem>>, %arg6: memref<64x128xbf16, #tpu.memory_space<vmem>>, %arg7: memref<1x128xf32, #tpu.memory_space<vmem>>, %arg8: memref<128x8xbf16, #tpu.memory_space<vmem>>, %arg9: memref<1x8xf32, #tpu.memory_space<vmem>>, %arg10: memref<8x8xf32, #tpu.memory_space<vmem>>) attributes {dimension_semantics = [#tpu.dimension_semantics<parallel>], iteration_bounds = array<i64: 1>, scalar_prefetch = 0 : i64, scratch_operands = 0 : i64, tpu.core_type = #tpu.core_type<tc>, window_params = [{transform_indices = @transform_0, window_bounds = array<i64: 8, 64>}, {pipeline_mode = #tpu.pipeline_mode<synchronous>, transform_indices = @transform_1, window_bounds = array<i64: 64, 32>}, {pipeline_mode = #tpu.pipeline_mode<synchronous>, transform_indices = @transform_2, window_bounds = array<i64: 1, 32>}, {pipeline_mode = #tpu.pipeline_mode<synchronous>, transform_indices = @transform_3, window_bounds = array<i64: 32, 64>}, {pipeline_mode = #tpu.pipeline_mode<synchronous>, transform_indices = @transform_4, window_bounds = array<i64: 1, 64>}, {pipeline_mode = #tpu.pipeline_mode<synchronous>, transform_indices = @transform_5, window_bounds = array<i64: 64, 128>}, {pipeline_mode = #tpu.pipeline_mode<synchronous>, transform_indices = @transform_6, window_bounds = array<i64: 1, 128>}, {pipeline_mode = #tpu.pipeline_mode<synchronous>, transform_indices = @transform_7, window_bounds = array<i64: 128, 8>}, {pipeline_mode = #tpu.pipeline_mode<synchronous>, transform_indices = @transform_8, window_bounds = array<i64: 1, 8>}, {transform_indices = @transform_9, window_bounds = array<i64: 8, 8>}]} {
    %c0 = arith.constant 0 : index
    %c0_0 = arith.constant 0 : index
    %0 = vector.load %arg1[%c0, %c0_0] : memref<8x64xf32, #tpu.memory_space<vmem>>, vector<8x64xf32>
    %1 = arith.truncf %0 : vector<8x64xf32> to vector<8x64xbf16>
    %c0_1 = arith.constant 0 : index
    %c0_2 = arith.constant 0 : index
    %2 = vector.load %arg2[%c0_1, %c0_2] : memref<64x32xbf16, #tpu.memory_space<vmem>>, vector<64x32xbf16>
    %cst = arith.constant dense<0.000000e+00> : vector<8x32xf32>
    %3 = tpu.matmul %1, %2, %cst {dimension_numbers = #tpu.dot_dimension_numbers<[1], [0], [0], [1], [0, 0, 1, 1], [], []>} : vector<8x64xbf16>, vector<64x32xbf16>, vector<8x32xf32> -> vector<8x32xf32>
    %c0_3 = arith.constant 0 : index
    %c0_4 = arith.constant 0 : index
    %4 = vector.load %arg3[%c0_3, %c0_4] : memref<1x32xf32, #tpu.memory_space<vmem>>, vector<1x32xf32>
    %5 = vector.broadcast %4 : vector<1x32xf32> to vector<8x32xf32>
    %6 = arith.addf %3, %5 : vector<8x32xf32>
    %cst_5 = arith.constant 0.000000e+00 : f32
    %7 = vector.broadcast %cst_5 : f32 to vector<8x32xf32>
    %8 = arith.maximumf %6, %7 : vector<8x32xf32>
    %9 = arith.truncf %8 : vector<8x32xf32> to vector<8x32xbf16>
    %c0_6 = arith.constant 0 : index
    %c0_7 = arith.constant 0 : index
    %10 = vector.load %arg4[%c0_6, %c0_7] : memref<32x64xbf16, #tpu.memory_space<vmem>>, vector<32x64xbf16>
    %cst_8 = arith.constant dense<0.000000e+00> : vector<8x64xf32>
    %11 = tpu.matmul %9, %10, %cst_8 {dimension_numbers = #tpu.dot_dimension_numbers<[1], [0], [0], [1], [0, 0, 1, 1], [], []>} : vector<8x32xbf16>, vector<32x64xbf16>, vector<8x64xf32> -> vector<8x64xf32>
    %c0_9 = arith.constant 0 : index
    %c0_10 = arith.constant 0 : index
    %12 = vector.load %arg5[%c0_9, %c0_10] : memref<1x64xf32, #tpu.memory_space<vmem>>, vector<1x64xf32>
    %13 = vector.broadcast %12 : vector<1x64xf32> to vector<8x64xf32>
    %14 = arith.addf %11, %13 : vector<8x64xf32>
    %cst_11 = arith.constant 0.000000e+00 : f32
    %15 = vector.broadcast %cst_11 : f32 to vector<8x64xf32>
    %16 = arith.maximumf %14, %15 : vector<8x64xf32>
    %17 = arith.truncf %16 : vector<8x64xf32> to vector<8x64xbf16>
    %c0_12 = arith.constant 0 : index
    %c0_13 = arith.constant 0 : index
    %18 = vector.load %arg6[%c0_12, %c0_13] : memref<64x128xbf16, #tpu.memory_space<vmem>>, vector<64x128xbf16>
    %cst_14 = arith.constant dense<0.000000e+00> : vector<8x128xf32>
    %19 = tpu.matmul %17, %18, %cst_14 {dimension_numbers = #tpu.dot_dimension_numbers<[1], [0], [0], [1], [0, 0, 1, 1], [], []>} : vector<8x64xbf16>, vector<64x128xbf16>, vector<8x128xf32> -> vector<8x128xf32>
    %c0_15 = arith.constant 0 : index
    %c0_16 = arith.constant 0 : index
    %20 = vector.load %arg7[%c0_15, %c0_16] : memref<1x128xf32, #tpu.memory_space<vmem>>, vector<1x128xf32>
    %21 = vector.broadcast %20 : vector<1x128xf32> to vector<8x128xf32>
    %22 = arith.addf %19, %21 : vector<8x128xf32>
    %cst_17 = arith.constant 0.000000e+00 : f32
    %23 = vector.broadcast %cst_17 : f32 to vector<8x128xf32>
    %24 = arith.maximumf %22, %23 : vector<8x128xf32>
    %25 = arith.truncf %24 : vector<8x128xf32> to vector<8x128xbf16>
    %c0_18 = arith.constant 0 : index
    %c0_19 = arith.constant 0 : index
    %26 = vector.load %arg8[%c0_18, %c0_19] : memref<128x8xbf16, #tpu.memory_space<vmem>>, vector<128x8xbf16>
    %cst_20 = arith.constant dense<0.000000e+00> : vector<8x8xf32>
    %27 = tpu.matmul %25, %26, %cst_20 {dimension_numbers = #tpu.dot_dimension_numbers<[1], [0], [0], [1], [0, 0, 1, 1], [], []>} : vector<8x128xbf16>, vector<128x8xbf16>, vector<8x8xf32> -> vector<8x8xf32>
    %c0_21 = arith.constant 0 : index
    %c0_22 = arith.constant 0 : index
    %28 = vector.load %arg9[%c0_21, %c0_22] : memref<1x8xf32, #tpu.memory_space<vmem>>, vector<1x8xf32>
    %29 = vector.broadcast %28 : vector<1x8xf32> to vector<8x8xf32>
    %30 = arith.addf %27, %29 : vector<8x8xf32>
    %c0_23 = arith.constant 0 : index
    %c0_24 = arith.constant 0 : index
    %31 = vector.load %arg10[%c0_23, %c0_24] : memref<8x8xf32, #tpu.memory_space<vmem>>, vector<8x8xf32>
    tpu.vector_store %arg10[%c0_23, %c0_24], %30 {strides = array<i32>} : memref<8x8xf32, #tpu.memory_space<vmem>>, vector<8x8xf32>,
    return
  }
  func.func @transform_0(%arg0: i32) -> (i32, i32) {
    %c0_i32 = arith.constant 0 : i32
    %c0_i32_0 = arith.constant 0 : i32
    return %arg0, %c0_i32 : i32, i32
  }
  func.func @transform_1(%arg0: i32) -> (i32, i32) {
    %c0_i32 = arith.constant 0 : i32
    %c0_i32_0 = arith.constant 0 : i32
    %c0_i32_1 = arith.constant 0 : i32
    return %c0_i32, %c0_i32_0 : i32, i32
  }
  func.func @transform_2(%arg0: i32) -> (i32, i32) {
    %c0_i32 = arith.constant 0 : i32
    %c0_i32_0 = arith.constant 0 : i32
    %c0_i32_1 = arith.constant 0 : i32
    return %c0_i32, %c0_i32_0 : i32, i32
  }
  func.func @transform_3(%arg0: i32) -> (i32, i32) {
    %c0_i32 = arith.constant 0 : i32
    %c0_i32_0 = arith.constant 0 : i32
    %c0_i32_1 = arith.constant 0 : i32
    return %c0_i32, %c0_i32_0 : i32, i32
  }
  func.func @transform_4(%arg0: i32) -> (i32, i32) {
    %c0_i32 = arith.constant 0 : i32
    %c0_i32_0 = arith.constant 0 : i32
    %c0_i32_1 = arith.constant 0 : i32
    return %c0_i32, %c0_i32_0 : i32, i32
  }
  func.func @transform_5(%arg0: i32) -> (i32, i32) {
    %c0_i32 = arith.constant 0 : i32
    %c0_i32_0 = arith.constant 0 : i32
    %c0_i32_1 = arith.constant 0 : i32
    return %c0_i32, %c0_i32_0 : i32, i32
  }
  func.func @transform_6(%arg0: i32) -> (i32, i32) {
    %c0_i32 = arith.constant 0 : i32
    %c0_i32_0 = arith.constant 0 : i32
    %c0_i32_1 = arith.constant 0 : i32
    return %c0_i32, %c0_i32_0 : i32, i32
  }
  func.func @transform_7(%arg0: i32) -> (i32, i32) {
    %c0_i32 = arith.constant 0 : i32
    %c0_i32_0 = arith.constant 0 : i32
    %c0_i32_1 = arith.constant 0 : i32
    return %c0_i32, %c0_i32_0 : i32, i32
  }
  func.func @transform_8(%arg0: i32) -> (i32, i32) {
    %c0_i32 = arith.constant 0 : i32
    %c0_i32_0 = arith.constant 0 : i32
    %c0_i32_1 = arith.constant 0 : i32
    return %c0_i32, %c0_i32_0 : i32, i32
  }
  func.func @transform_9(%arg0: i32) -> (i32, i32) {
    %c0_i32 = arith.constant 0 : i32
    %c0_i32_0 = arith.constant 0 : i32
    return %arg0, %c0_i32 : i32, i32
  }
}

</mosaic_0001>

<llo_original>
// kernel: mlp_forward.1
$region0: #{mlp_forward.1}
  #allocation0 [shape = 'u32[]', space=smem, size = 0x4, offset = 0x4, fixed_abs, tag = 'smem constant byte address 0x4 - core index']
  #allocation1 [shape = 'u32[144,128]{1,0:T(1,128)}', space=vmem, size = 0x12000, scoped, tag = 'internal scratch']
  %s0 = inlined_call_operand.vmem [shape: f32[8,64], index: 0, kind: input, shape index: {}]
  %s1 = inlined_call_operand.vmem [shape: bf16[64,32], index: 1, kind: input, shape index: {}]
  %s2 = inlined_call_operand.vmem [shape: f32[1,32], index: 2, kind: input, shape index: {}]
  %s3 = inlined_call_operand.vmem [shape: bf16[32,64], index: 3, kind: input, shape index: {}]
  %s4 = inlined_call_operand.vmem [shape: f32[1,64], index: 4, kind: input, shape index: {}]
  %s5 = inlined_call_operand.vmem [shape: bf16[64,128], index: 5, kind: input, shape index: {}]
  %s6 = inlined_call_operand.vmem [shape: f32[1,128], index: 6, kind: input, shape index: {}]
  %s7 = inlined_call_operand.vmem [shape: bf16[128,8], index: 7, kind: input, shape index: {}]
  %s8 = inlined_call_operand.vmem [shape: f32[1,8], index: 8, kind: input, shape index: {}]
  %s9 = inlined_call_operand.hbm [shape: f32[8,8], index: 9, kind: output, shape index: {}]
  %s10 = sld [smem:[#allocation0]]
  $region46: #{mlp_forward.1} parent=0
    _
  %s12 = ssub.s32 1, %s10
  %s13 = scalar_select 0, %s12, %s10
  $region1: #{mlp_forward.1} parent=0
    #allocation2 [shape = 'u8[4096]{0}', space=vmem, size = 0x1000, scoped, tag = 'output window, operand 0, single buffered']
    #allocation3 [shape = 's32[1]{0}', space=sflag, size = 0x4, scoped, tag = 'scoped memory for mlp_forward.1']
    %14 = vsyncpa [#allocation3], 0
    // Predicated region
    $region2: #{mlp_forward.1} parent=1 // pred_check
      _
    $region3: #{mlp_forward.1} parent=1 // pred_check_branch
      %16 = sbr.rel (0) target = $region5
    $region4: #{mlp_forward.1} parent=1 // pred_region
      _
    $region5: #{mlp_forward.1} parent=1 // pred_fallthru
      _
    // Predicated region
    $region6: #{mlp_forward.1} parent=1 // pred_check
      _
    $region7: #{mlp_forward.1} parent=1 // pred_check_branch
      %18 = sbr.rel (0) target = $region9
    $region8: #{mlp_forward.1} parent=1 // pred_region
      _
    $region9: #{mlp_forward.1} parent=1 // pred_fallthru
      _
    // Predicated region
    $region10: #{mlp_forward.1} parent=1 // pred_check
      _
    $region11: #{mlp_forward.1} parent=1 // pred_check_branch
      %20 = sbr.rel (0) target = $region13
    $region12: #{mlp_forward.1} parent=1 // pred_region
      _
    $region13: #{mlp_forward.1} parent=1 // pred_fallthru
      _
    // Predicated region
    $region14: #{mlp_forward.1} parent=1 // pred_check
      _
    $region15: #{mlp_forward.1} parent=1 // pred_check_branch
      %22 = sbr.rel (0) target = $region17
    $region16: #{mlp_forward.1} parent=1 // pred_region
      _
    $region17: #{mlp_forward.1} parent=1 // pred_fallthru
      _
    // Predicated region
    $region18: #{mlp_forward.1} parent=1 // pred_check
      _
    $region19: #{mlp_forward.1} parent=1 // pred_check_branch
      %24 = sbr.rel (0) target = $region21
    $region20: #{mlp_forward.1} parent=1 // pred_region
      _
    $region21: #{mlp_forward.1} parent=1 // pred_fallthru
      _
    // Predicated region
    $region22: #{mlp_forward.1} parent=1 // pred_check
      _
    $region23: #{mlp_forward.1} parent=1 // pred_check_branch
      %26 = sbr.rel (0) target = $region25
    $region24: #{mlp_forward.1} parent=1 // pred_region
      _
    $region25: #{mlp_forward.1} parent=1 // pred_fallthru
      _
    // Predicated region
    $region26: #{mlp_forward.1} parent=1 // pred_check
      _
    $region27: #{mlp_forward.1} parent=1 // pred_check_branch
      %28 = sbr.rel (0) target = $region29
    $region28: #{mlp_forward.1} parent=1 // pred_region
      _
    $region29: #{mlp_forward.1} parent=1 // pred_fallthru
      _
    // Predicated region
    $region30: #{mlp_forward.1} parent=1 // pred_check
      _
    $region31: #{mlp_forward.1} parent=1 // pred_check_branch
      %30 = sbr.rel (0) target = $region33
    $region32: #{mlp_forward.1} parent=1 // pred_region
      _
    $region33: #{mlp_forward.1} parent=1 // pred_fallthru
      _
    // Predicated region
    $region34: #{mlp_forward.1} parent=1 // pred_check
      _
    $region35: #{mlp_forward.1} parent=1 // pred_check_branch
      %32 = sbr.rel (0) target = $region37
    $region36: #{mlp_forward.1} parent=1 // pred_region
      _
    $region37: #{mlp_forward.1} parent=1 // pred_fallthru
      _
    %v34 = vld [vmem:[%s0] sm:$0xff]
    %v35 = vpack.c.bf16 %v34, %v34
    %v36 = vld [vmem:[%s1] sm:$0xf]
    %v37 = vld [vmem:[%s1 + $0x4] sm:$0xf]
    %v38 = vld [vmem:[%s1 + $0x8] sm:$0xf]
    %v39 = vld [vmem:[%s1 + $0xc] sm:$0xf]
    %v40 = vld [vmem:[%s1 + $0x10] sm:$0xf]
    %v41 = vld [vmem:[%s1 + $0x14] sm:$0xf]
    %v42 = vld [vmem:[%s1 + $0x18] sm:$0xf]
    %v43 = vld [vmem:[%s1 + $0x1c] sm:$0xf]
    %v44 = vld [vmem:[%s2] sm:$0x1]
    %v46 = vlaneseq
    %v47 = vshrl.u32 %v46, 7
    %v48 = vsub.s32 0, %v47
    %v49 = vrot.slane %v44, %v48
    %v59 = vunpack.c.l.b16 %v36
    %v60 = vunpack.c.l.b16 %v37
    %v61 = vunpack.c.l.b16 %v38
    %v62 = vunpack.c.l.b16 %v39
    %v63 = vunpack.c.l.b16 %v40
    %v64 = vunpack.c.l.b16 %v41
    %v65 = vunpack.c.l.b16 %v42
    %v66 = vunpack.c.l.b16 %v43
    %v67 = vpack.c.b16 %v60, %v59
    %v68 = vpack.c.b16 %v62, %v61
    %v69 = vpack.c.b16 %v64, %v63
    %v70 = vpack.c.b16 %v66, %v65
    %vm75 = vcmask 523264
    %v77 = vsel %vm75, %v35, 0
    %79 = vmatprep.subr.bf16.mxu0 0
    %80 = vmatpush1.bf16.msra.mxu0 0
    %81 = vmatprep.subr.bf16.mxu0 0
    %82 = vmatpush1.bf16.msra.mxu0 0
    %83 = vmatprep.subr.bf16.mxu0 0
    %84 = vmatpush1.bf16.msra.mxu0 0
    %85 = vmatprep.subr.bf16.mxu0 0
    %86 = vmatpush1.bf16.msra.mxu0 0
    %87 = vmatprep.subr.bf16.mxu0 0
    %88 = vmatpush1.bf16.msra.mxu0 %v70
    %89 = vmatprep.subr.bf16.mxu0 0
    %90 = vmatpush1.bf16.msra.mxu0 %v69
    %91 = vmatprep.subr.bf16.mxu0 0
    %92 = vmatpush1.bf16.msra.mxu0 %v68
    %93 = vmatprep.subr.bf16.mxu0 0
    %94 = vmatpush1.bf16.msra.mxu0 %v67
    %95 = vmatprep.subr.bf16.mxu0 0
    %96 = vmatpush2.bf16.msra.mxu0 0
    %97 = vmatprep.subr.bf16.mxu0 0
    %98 = vmatpush2.bf16.msra.mxu0 0
    %99 = vmatprep.subr.bf16.mxu0 0
    %100 = vmatpush2.bf16.msra.mxu0 0
    %101 = vmatprep.subr.bf16.mxu0 0
    %102 = vmatpush2.bf16.msra.mxu0 0
    %103 = vmatprep.subr.bf16.mxu0 0
    %104 = vmatpush2.bf16.msra.mxu0 0
    %105 = vmatprep.subr.bf16.mxu0 0
    %106 = vmatpush2.bf16.msra.mxu0 0
    %107 = vmatprep.subr.bf16.mxu0 0
    %108 = vmatpush2.bf16.msra.mxu0 0
    %109 = vmatprep.subr.bf16.mxu0 0
    %110 = vmatpush2.bf16.msra.mxu0 0
    %111 = vmatprep.mubr.bf16.mxu0 0
    %112 = vmatmul.mubr.bf16.gmra.mxu0 %v77
    %v113 = vpop.f32.mrf.mxu0
    %v114 = vadd.f32 %v49, %v113
    %v115 = vpop.f32.mrf.mxu0
    %v116 = vpop.f32.mrf.mxu0
    %v117 = vpop.f32.mrf.mxu0
    %118 = vdwg.mxu0
    %v119 = vmax.f32 %v114, 0.0
    %v120 = vpack.c.bf16 %v119, %v119
    %v121 = vld [vmem:[%s3] sm:$0xf]
    %v122 = vld [vmem:[%s3 + $0x4] sm:$0xf]
    %v123 = vld [vmem:[%s3 + $0x8] sm:$0xf]
    %v124 = vld [vmem:[%s3 + $0xc] sm:$0xf]
    %v125 = vld [vmem:[%s4] sm:$0x1]
    %v127 = vlaneseq
    %v128 = vshrl.u32 %v127, 7
    %v129 = vsub.s32 0, %v128
    %v130 = vrot.slane %v125, %v129
    %v136 = vunpack.c.l.b16 %v121
    %v137 = vunpack.c.l.b16 %v122
    %v138 = vunpack.c.l.b16 %v123
    %v139 = vunpack.c.l.b16 %v124
    %v140 = vpack.c.b16 %v137, %v136
    %v141 = vpack.c.b16 %v139, %v138
    %vm144 = vcmask 261120
    %v146 = vsel %vm144, %v120, 0
    %148 = vmatprep.subr.bf16.mxu0 0
    %149 = vmatpush1.bf16.msra.mxu0 0
    %150 = vmatprep.subr.bf16.mxu0 0
    %151 = vmatpush1.bf16.msra.mxu0 0
    %152 = vmatprep.subr.bf16.mxu0 0
    %153 = vmatpush1.bf16.msra.mxu0 0
    %154 = vmatprep.subr.bf16.mxu0 0
    %155 = vmatpush1.bf16.msra.mxu0 0
    %156 = vmatprep.subr.bf16.mxu0 0
    %157 = vmatpush1.bf16.msra.mxu0 0
    %158 = vmatprep.subr.bf16.mxu0 0
    %159 = vmatpush1.bf16.msra.mxu0 0
    %160 = vmatprep.subr.bf16.mxu0 0
    %161 = vmatpush1.bf16.msra.mxu0 %v141
    %162 = vmatprep.subr.bf16.mxu0 0
    %163 = vmatpush1.bf16.msra.mxu0 %v140
    %164 = vmatprep.subr.bf16.mxu0 0
    %165 = vmatpush2.bf16.msra.mxu0 0
    %166 = vmatprep.subr.bf16.mxu0 0
    %167 = vmatpush2.bf16.msra.mxu0 0
    %168 = vmatprep.subr.bf16.mxu0 0
    %169 = vmatpush2.bf16.msra.mxu0 0
    %170 = vmatprep.subr.bf16.mxu0 0
    %171 = vmatpush2.bf16.msra.mxu0 0
    %172 = vmatprep.subr.bf16.mxu0 0
    %173 = vmatpush2.bf16.msra.mxu0 0
    %174 = vmatprep.subr.bf16.mxu0 0
    %175 = vmatpush2.bf16.msra.mxu0 0
    %176 = vmatprep.subr.bf16.mxu0 0
    %177 = vmatpush2.bf16.msra.mxu0 0
    %178 = vmatprep.subr.bf16.mxu0 0
    %179 = vmatpush2.bf16.msra.mxu0 0
    %180 = vmatprep.mubr.bf16.mxu0 0
    %181 = vmatmul.mubr.bf16.gmra.mxu0 %v146
    %v182 = vpop.f32.mrf.mxu0
    %v183 = vadd.f32 %v130, %v182
    %v184 = vpop.f32.mrf.mxu0
    %v185 = vpop.f32.mrf.mxu0
    %v186 = vpop.f32.mrf.mxu0
    %187 = vdwg.mxu0
    %v188 = vmax.f32 %v183, 0.0
    %v189 = vpack.c.bf16 %v188, %v188
    %v190 = vld [vmem:[%s5] sm:$0xf]
    %v191 = vld [vmem:[%s5 + $0x4] sm:$0xf]
    %v192 = vld [vmem:[%s5 + $0x8] sm:$0xf]
    %v193 = vld [vmem:[%s5 + $0xc] sm:$0xf]
    %v194 = vld [vmem:[%s5 + $0x10] sm:$0xf]
    %v195 = vld [vmem:[%s5 + $0x14] sm:$0xf]
    %v196 = vld [vmem:[%s5 + $0x18] sm:$0xf]
    %v197 = vld [vmem:[%s5 + $0x1c] sm:$0xf]
    %v198 = vld [vmem:[%s6] sm:$0x1]
    %v200 = vlaneseq
    %v201 = vshrl.u32 %v200, 7
    %v202 = vsub.s32 0, %v201
    %v203 = vrot.slane %v198, %v202
    %v213 = vunpack.c.l.b16 %v190
    %v214 = vunpack.c.l.b16 %v191
    %v215 = vunpack.c.l.b16 %v192
    %v216 = vunpack.c.l.b16 %v193
    %v217 = vunpack.c.l.b16 %v194
    %v218 = vunpack.c.l.b16 %v195
    %v219 = vunpack.c.l.b16 %v196
    %v220 = vunpack.c.l.b16 %v197
    %v221 = vpack.c.b16 %v214, %v213
    %v222 = vpack.c.b16 %v216, %v215
    %v223 = vpack.c.b16 %v218, %v217
    %v224 = vpack.c.b16 %v220, %v219
    %v230 = vsel %vm75, %v189, 0
    %232 = vmatprep.subr.bf16.mxu0 0
    %233 = vmatpush1.bf16.msra.mxu0 0
    %234 = vmatprep.subr.bf16.mxu0 0
    %235 = vmatpush1.bf16.msra.mxu0 0
    %236 = vmatprep.subr.bf16.mxu0 0
    %237 = vmatpush1.bf16.msra.mxu0 0
    %238 = vmatprep.subr.bf16.mxu0 0
    %239 = vmatpush1.bf16.msra.mxu0 0
    %240 = vmatprep.subr.bf16.mxu0 0
    %241 = vmatpush1.bf16.msra.mxu0 %v224
    %242 = vmatprep.subr.bf16.mxu0 0
    %243 = vmatpush1.bf16.msra.mxu0 %v223
    %244 = vmatprep.subr.bf16.mxu0 0
    %245 = vmatpush1.bf16.msra.mxu0 %v222
    %246 = vmatprep.subr.bf16.mxu0 0
    %247 = vmatpush1.bf16.msra.mxu0 %v221
    %248 = vmatprep.subr.bf16.mxu0 0
    %249 = vmatpush2.bf16.msra.mxu0 0
    %250 = vmatprep.subr.bf16.mxu0 0
    %251 = vmatpush2.bf16.msra.mxu0 0
    %252 = vmatprep.subr.bf16.mxu0 0
    %253 = vmatpush2.bf16.msra.mxu0 0
    %254 = vmatprep.subr.bf16.mxu0 0
    %255 = vmatpush2.bf16.msra.mxu0 0
    %256 = vmatprep.subr.bf16.mxu0 0
    %257 = vmatpush2.bf16.msra.mxu0 0
    %258 = vmatprep.subr.bf16.mxu0 0
    %259 = vmatpush2.bf16.msra.mxu0 0
    %260 = vmatprep.subr.bf16.mxu0 0
    %261 = vmatpush2.bf16.msra.mxu0 0
    %262 = vmatprep.subr.bf16.mxu0 0
    %263 = vmatpush2.bf16.msra.mxu0 0
    %264 = vmatprep.mubr.bf16.mxu0 0
    %265 = vmatmul.mubr.bf16.gmra.mxu0 %v230
    %v266 = vpop.f32.mrf.mxu0
    %v267 = vadd.f32 %v203, %v266
    %v268 = vpop.f32.mrf.mxu0
    %v269 = vpop.f32.mrf.mxu0
    %v270 = vpop.f32.mrf.mxu0
    %271 = vdwg.mxu0
    %v272 = vmax.f32 %v267, 0.0
    %v273 = vpack.c.bf16 %v272, %v272
    %v274 = vld [vmem:[%s7] sm:$0xf]
    %v275 = vld [vmem:[%s7 + $0x4] sm:$0xf]
    %v276 = vld [vmem:[%s7 + $0x8] sm:$0xf]
    %v277 = vld [vmem:[%s7 + $0xc] sm:$0xf]
    %v278 = vld [vmem:[%s7 + $0x10] sm:$0xf]
    %v279 = vld [vmem:[%s7 + $0x14] sm:$0xf]
    %v280 = vld [vmem:[%s7 + $0x18] sm:$0xf]
    %v281 = vld [vmem:[%s7 + $0x1c] sm:$0xf]
    %v282 = vld [vmem:[%s7 + $0x20] sm:$0xf]
    %v283 = vld [vmem:[%s7 + $0x24] sm:$0xf]
    %v284 = vld [vmem:[%s7 + $0x28] sm:$0xf]
    %v285 = vld [vmem:[%s7 + $0x2c] sm:$0xf]
    %v286 = vld [vmem:[%s7 + $0x30] sm:$0xf]
    %v287 = vld [vmem:[%s7 + $0x34] sm:$0xf]
    %v288 = vld [vmem:[%s7 + $0x38] sm:$0xf]
    %v289 = vld [vmem:[%s7 + $0x3c] sm:$0xf]
    %v290 = vld [vmem:[%s8] sm:$0x1]
    %v292 = vlaneseq
    %v293 = vshrl.u32 %v292, 7
    %v294 = vsub.s32 0, %v293
    %v295 = vrot.slane %v290, %v294
    %v313 = vunpack.c.l.b16 %v274
    %v314 = vunpack.c.l.b16 %v275
    %v315 = vunpack.c.l.b16 %v276
    %v316 = vunpack.c.l.b16 %v277
    %v317 = vunpack.c.l.b16 %v278
    %v318 = vunpack.c.l.b16 %v279
    %v319 = vunpack.c.l.b16 %v280
    %v320 = vunpack.c.l.b16 %v281
    %v321 = vunpack.c.l.b16 %v282
    %v322 = vunpack.c.l.b16 %v283
    %v323 = vunpack.c.l.b16 %v284
    %v324 = vunpack.c.l.b16 %v285
    %v325 = vunpack.c.l.b16 %v286
    %v326 = vunpack.c.l.b16 %v287
    %v327 = vunpack.c.l.b16 %v288
    %v328 = vunpack.c.l.b16 %v289
    %v329 = vpack.c.b16 %v314, %v313
    %v330 = vpack.c.b16 %v316, %v315
    %v331 = vpack.c.b16 %v318, %v317
    %v332 = vpack.c.b16 %v320, %v319
    %v333 = vpack.c.b16 %v322, %v321
    %v334 = vpack.c.b16 %v324, %v323
    %v335 = vpack.c.b16 %v326, %v325
    %v336 = vpack.c.b16 %v328, %v327
    %345 = vmatprep.subr.bf16.mxu0 0
    %346 = vmatpush1.bf16.msra.mxu0 %v336
    %347 = vmatprep.subr.bf16.mxu0 0
    %348 = vmatpush1.bf16.msra.mxu0 %v335
    %349 = vmatprep.subr.bf16.mxu0 0
    %350 = vmatpush1.bf16.msra.mxu0 %v334
    %351 = vmatprep.subr.bf16.mxu0 0
    %352 = vmatpush1.bf16.msra.mxu0 %v333
    %353 = vmatprep.subr.bf16.mxu0 0
    %354 = vmatpush1.bf16.msra.mxu0 %v332
    %355 = vmatprep.subr.bf16.mxu0 0
    %356 = vmatpush1.bf16.msra.mxu0 %v331
    %357 = vmatprep.subr.bf16.mxu0 0
    %358 = vmatpush1.bf16.msra.mxu0 %v330
    %359 = vmatprep.subr.bf16.mxu0 0
    %360 = vmatpush1.bf16.msra.mxu0 %v329
    %361 = vmatprep.subr.bf16.mxu0 0
    %362 = vmatpush2.bf16.msra.mxu0 0
    %363 = vmatprep.subr.bf16.mxu0 0
    %364 = vmatpush2.bf16.msra.mxu0 0
    %365 = vmatprep.subr.bf16.mxu0 0
    %366 = vmatpush2.bf16.msra.mxu0 0
    %367 = vmatprep.subr.bf16.mxu0 0
    %368 = vmatpush2.bf16.msra.mxu0 0
    %369 = vmatprep.subr.bf16.mxu0 0
    %370 = vmatpush2.bf16.msra.mxu0 0
    %371 = vmatprep.subr.bf16.mxu0 0
    %372 = vmatpush2.bf16.msra.mxu0 0
    %373 = vmatprep.subr.bf16.mxu0 0
    %374 = vmatpush2.bf16.msra.mxu0 0
    %375 = vmatprep.subr.bf16.mxu0 0
    %376 = vmatpush2.bf16.msra.mxu0 0
    %377 = vmatprep.mubr.bf16.mxu0 0
    %378 = vmatmul.mubr.bf16.gmra.mxu0 %v273
    %v379 = vpop.f32.mrf.mxu0
    %v380 = vadd.f32 %v295, %v379
    %v381 = vpop.f32.mrf.mxu0
    %v382 = vpop.f32.mrf.mxu0
    %v383 = vpop.f32.mrf.mxu0
    %384 = vdwg.mxu0
    %vm385 = vcmask 64512
    %386 = vst.msk [vmem:[#allocation2] sm:$0xff] %vm385, %v380
    // Predicated region
    $region38: #{mlp_forward.1} parent=1 // pred_check
      _
    $region39: #{mlp_forward.1} parent=1 // pred_check_branch
      %388 = sbr.rel (0) target = $region41
    $region40: #{mlp_forward.1} parent=1 // pred_region
      %s390 = ssub.s32 128, 128
      %391 = vsyncadd [#allocation3], %s390
      %s393 = sshll.u32 [#allocation2], 4
      %s394 = int_to_ptr.vmem [resolvable:$true] %s393
      %396 = dma.vmem_to_hbm [thread:$0]  %s394, 128, %s9, [#allocation3]
    $region41: #{mlp_forward.1} parent=1 // pred_fallthru
      _
    // Predicated region
    $region42: #{mlp_forward.1} parent=1 // pred_check
      _
    $region43: #{mlp_forward.1} parent=1 // pred_check_branch
      %398 = sbr.rel (0) target = $region45
    $region44: #{mlp_forward.1} parent=1 // pred_region
      %399 = dma.done [#allocation3], 128
    $region45: #{mlp_forward.1} parent=1 // pred_fallthru
      _
    %400 = vsyncpa [#allocation3], 1

</llo_original>
